<compile_context>
chip_gen: v5e
topology: v5e:2x2
jax: 0.10.0
libtpu: 0.0.40
codegen_flags: <defaults>
</compile_context>

<pallas_src>
import math
import jax
import jax.numpy as jnp
import numpy as np
from jax.experimental import pallas as pl
from jax.experimental.pallas import tpu as pltpu


# ----------------------------------------------------------------------------
# helpers mirroring the PyTorch module's __init__ logic
# ----------------------------------------------------------------------------
def _find_closest_divisor(total: int, target: int) -> int:
    best, best_dist = 1, abs(1 - target)
    for d in range(1, total + 1):
        if total % d == 0:
            dist = abs(d - target)
            if dist < best_dist:
                best, best_dist = d, dist
    return best


def _chunk_token_overlap(S: int, H: int, L_new: int, C_new: int) -> np.ndarray:
    """ov[s, l] = # flattened positions of token s landing in latent chunk l.

    Uses the NON-stacked flattening, exactly matching the reference module's
    latent_pad computation (which deliberately differs from the stacked order
    used for z -- harmless because the mask is identical across hidden dims).
    """
    ov = np.zeros((S, L_new), dtype=np.float32)
    for l in range(L_new):
        lo, hi = l * C_new, (l + 1) * C_new
        for s in range(lo // H, (hi - 1) // H + 1):
            ov[s, l] = min(hi, (s + 1) * H) - max(lo, s * H)
    return ov


def _vmem_budget_bytes() -> int:
    """Generation-aware scoped-VMEM cap (headroom below physical VMEM)."""
    try:
        cap = int(getattr(pltpu.get_tpu_info(), "vmem_capacity_bytes", 128 << 20))
    except Exception:
        cap = 128 << 20
    if cap <= (64 << 20):        # v7x: 64 MiB physical per TensorCore
        return 40 << 20
    return 96 << 20              # v5e / v6e: 128 MiB physical


def _pick_row_tile(M: int, K: int, d_new: int,
                   x_bytes: int, out_bytes: int, vmem_limit: int) -> int:
    """Rows per grid step: sized by bytes (not a fixed row cap), aligned to the
    sublane packing of the input dtype, and split so >= 2 grid steps exist."""
    align = 16 if x_bytes < 4 else 8
    if M <= align:
        return M                                   # full-extent block is legal
    # double-buffered bytes per row across x-tile, keep-tile and out-tile
    per_row = 2 * (K * x_bytes + 4 + d_new * out_bytes)
    budget = max(1 << 20, vmem_limit // 2)         # headroom for W/bias/scratch
    max_rows = max(align, (budget // per_row) // align * align)
    max_rows = min(max_rows, 32768)                # keep ragged tail modest
    tm = min(max_rows, (M // align) * align)
    # ensure >= 2 grid steps when possible so v7x's two TensorCores both work
    if M >= 2 * align and pl.cdiv(M, tm) < 2:
        tm = max(align, (M // (2 * align)) * align)
    return int(tm)


# ----------------------------------------------------------------------------
# Pallas kernel: one row-tile of the flattened GEMM + keep/bias epilogue
# ----------------------------------------------------------------------------
def _latent_gemm_kernel(x_ref, w_ref, b_ref, keep_ref, o_ref):
    # x_ref:    (tm, C_new)     mask-multiplied, head-stacked chunk rows
    # w_ref:    (C_new, d_new)  resident weight
    # b_ref:    (1, d_new)      resident bias (f32)
    # keep_ref: (tm, 1)         f32 {0,1} = !latent_pad per row
    # o_ref:    (tm, d_new)
    acc = jnp.dot(x_ref[...], w_ref[...], preferred_element_type=jnp.float32)
    o_ref[...] = (keep_ref[...] * (acc + b_ref[...])).astype(o_ref.dtype)


def initial_latent_transform(x, mask, w_to_latent, b_to_latent,
                             nh_stack: int, L_new: int, C_new: int, d_new: int,
                             input_dtype=jnp.bfloat16):
    """Pallas implementation of InitialLatentTransform.forward.

    x:    [B, S, H] float32
    mask: [B, S]    float32 (1.0 valid token, 0.0 pad) or None
    w_to_latent: [C_new, d_new]  (transpose of torch Linear weight)
    b_to_latent: [d_new]
    input_dtype: dtype fed to the MXU for x and W (bf16 default, f32 accumulate);
                 pass jnp.float32 for strict parity with the torch module.
    Returns (z [B, L_new, d_new], latent_pad [B, L_new] bool or None).
    """
    B, S, H = x.shape
    dk = H // nh_stack
    out_dtype = x.dtype
    if input_dtype is None:
        input_dtype = x.dtype
    M = B * L_new

    # --- latent_pad / keep from the [B,S] mask alone (no [B,S,H] broadcast) --
    if mask is not None:
        ov = jnp.asarray(_chunk_token_overlap(S, H, L_new, C_new))   # [S, L_new]
        chunk_sum = mask.astype(jnp.float32) @ ov                    # [B, L_new]
        latent_pad = chunk_sum == 0.0                                # [B, L_new]
        keep = (~latent_pad).astype(jnp.float32)
        xm = x * mask[:, :, None].astype(x.dtype)
    else:
        latent_pad = None
        keep = jnp.ones((B, L_new), jnp.float32)
        xm = x

    # --- head-stack + chunk: one fused mask-mul + transpose in XLA -----------
    # x_stacked[b, h*S + s, :] = (x*mask)[b, s, h*dk:(h+1)*dk]
    x_stacked = jnp.transpose(xm.reshape(B, S, nh_stack, dk), (0, 2, 1, 3))
    x_flat = x_stacked.reshape(M, C_new).astype(input_dtype)         # [M, C_new]
    w = w_to_latent.astype(input_dtype)                              # [C_new, d_new]
    b2d = b_to_latent.reshape(1, d_new).astype(jnp.float32)          # [1, d_new]
    keep2d = keep.reshape(M, 1)                                      # [M, 1] f32

    vmem_limit = _vmem_budget_bytes()
    tm = _pick_row_tile(M, C_new, d_new,
                        x_bytes=jnp.dtype(input_dtype).itemsize,
                        out_bytes=jnp.dtype(out_dtype).itemsize,
                        vmem_limit=vmem_limit)
    n_tiles = pl.cdiv(M, tm)

    z_flat = pl.pallas_call(
        _latent_gemm_kernel,
        out_shape=jax.ShapeDtypeStruct((M, d_new), out_dtype),
        grid_spec=pltpu.PrefetchScalarGridSpec(
            num_scalar_prefetch=0,
            grid=(n_tiles,),
            in_specs=[
                pl.BlockSpec((tm, C_new), lambda i: (i, 0)),      # x rows (stream)
                pl.BlockSpec((C_new, d_new), lambda i: (0, 0)),   # W   (resident)
                pl.BlockSpec((1, d_new), lambda i: (0, 0)),       # bias (resident)
                pl.BlockSpec((tm, 1), lambda i: (i, 0)),          # keep gate
            ],
            out_specs=pl.BlockSpec((tm, d_new), lambda i: (i, 0)),
        ),
        compiler_params=pltpu.CompilerParams(
            dimension_semantics=("parallel",),
            vmem_limit_bytes=vmem_limit),
    )(x_flat, w, b2d, keep2d)

    z = z_flat.reshape(B, L_new, d_new)
    return z, latent_pad


# ----------------------------------------------------------------------------
# pure-JAX reference (mirrors the PyTorch forward exactly)
# ----------------------------------------------------------------------------
def _reference(x, mask, w, b, nh_stack, L_new, C_new):
    B, S, H = x.shape
    xm = x * mask[:, :, None]
    x_stacked = jnp.concatenate(jnp.split(xm, nh_stack, axis=-1), axis=1)  # [B, S*nh, dk]
    z = x_stacked.reshape(B, -1).reshape(B, L_new, C_new)
    z = z @ w + b
    mef = jnp.broadcast_to(mask[:, :, None], (B, S, H)).reshape(B, L_new, C_new)
    latent_pad = mef.sum(-1) == 0
    z = jnp.where(latent_pad[:, :, None], 0.0, z)
    return z, latent_pad


if __name__ == "__main__":
    # --- config (small, consistent with the module) --------------------------
    B, S, H = 2, 8, 32          # batch, static_seq_len, hidden_size
    nh_stack = 4                # cfg_attn.num_heads_stacking
    d_new = 16                  # cfg_attn.d_new
    target_L = None             # cfg_attn.target_l_new

    total = S * H
    L_new = _find_closest_divisor(total, target_L or max(2, S // 2))
    C_new = total // L_new

    # --- deterministic params / inputs ---------------------------------------
    key = jax.random.PRNGKey(0)
    kx, kw, kb = jax.random.split(key, 3)
    x = jax.random.normal(kx, (B, S, H), dtype=jnp.float32)
    # torch Linear(C_new, d_new): weight [d_new, C_new]; we store W^T = [C_new, d_new]
    bound = 1.0 / math.sqrt(C_new)
    w_to_latent = jax.random.uniform(kw, (C_new, d_new), jnp.float32, -bound, bound)
    b_to_latent = jax.random.uniform(kb, (d_new,), jnp.float32, -bound, bound)

    # mask: 1 for valid tokens, 0 for pad (batch 0: 6 valid, batch 1: 4 valid)
    lengths = jnp.array([6, 4])
    mask = (jnp.arange(S)[None, :] < lengths[:, None]).astype(jnp.float32)

    z_ref, pad_ref = _reference(x, mask, w_to_latent, b_to_latent, nh_stack, L_new, C_new)

    # --- strict f32-parity path ----------------------------------------------
    z32, pad32 = initial_latent_transform(
        x, mask, w_to_latent, b_to_latent, nh_stack, L_new, C_new, d_new,
        input_dtype=jnp.float32)
    z32 = jax.block_until_ready(z32)
    np.testing.assert_allclose(np.asarray(z32), np.asarray(z_ref), rtol=1e-5, atol=1e-5)
    np.testing.assert_array_equal(np.asarray(pad32), np.asarray(pad_ref))

    # --- default bf16-fed MXU path (f32 accumulation) -------------------------
    z16, pad16 = initial_latent_transform(
        x, mask, w_to_latent, b_to_latent, nh_stack, L_new, C_new, d_new)
    z16 = jax.block_until_ready(z16)
    np.testing.assert_allclose(np.asarray(z16), np.asarray(z_ref), rtol=3e-2, atol=3e-2)
    np.testing.assert_array_equal(np.asarray(pad16), np.asarray(pad_ref))

    # TODO(synk): self.dropout is declared in __init__ but never applied in forward, so it is omitted.
    print("KERNEL_OK")
</pallas_src>

<mosaic_0001>
module attributes {stable_mosaic.version = 11 : i64} {
  func.func @_latent_gemm_kernel(%arg0: i32, %arg1: memref<8x64xf32, #tpu.memory_space<vmem>>, %arg2: memref<64x16xf32, #tpu.memory_space<vmem>>, %arg3: memref<1x16xf32, #tpu.memory_space<vmem>>, %arg4: memref<8x1xf32, #tpu.memory_space<vmem>>, %arg5: memref<8x16xf32, #tpu.memory_space<vmem>>) attributes {dimension_semantics = [#tpu.dimension_semantics<parallel>], iteration_bounds = array<i64: 1>, scalar_prefetch = 0 : i64, scratch_operands = 0 : i64, tpu.core_type = #tpu.core_type<tc>, window_params = [{transform_indices = @transform_0, window_bounds = array<i64: 8, 64>}, {pipeline_mode = #tpu.pipeline_mode<synchronous>, transform_indices = @transform_1, window_bounds = array<i64: 64, 16>}, {pipeline_mode = #tpu.pipeline_mode<synchronous>, transform_indices = @transform_2, window_bounds = array<i64: 1, 16>}, {transform_indices = @transform_3, window_bounds = array<i64: 8, 1>}, {transform_indices = @transform_4, window_bounds = array<i64: 8, 16>}]} {
    %c0 = arith.constant 0 : index
    %c0_0 = arith.constant 0 : index
    %0 = vector.load %arg1[%c0, %c0_0] : memref<8x64xf32, #tpu.memory_space<vmem>>, vector<8x64xf32>
    %c0_1 = arith.constant 0 : index
    %c0_2 = arith.constant 0 : index
    %1 = vector.load %arg2[%c0_1, %c0_2] : memref<64x16xf32, #tpu.memory_space<vmem>>, vector<64x16xf32>
    %cst = arith.constant dense<0.000000e+00> : vector<8x16xf32>
    %2 = tpu.matmul %0, %1, %cst {dimension_numbers = #tpu.dot_dimension_numbers<[1], [0], [0], [1], [0, 0, 1, 1], [], []>} : vector<8x64xf32>, vector<64x16xf32>, vector<8x16xf32> -> vector<8x16xf32>
    %c0_3 = arith.constant 0 : index
    %c0_4 = arith.constant 0 : index
    %3 = vector.load %arg4[%c0_3, %c0_4] : memref<8x1xf32, #tpu.memory_space<vmem>>, vector<8x1xf32>
    %c0_5 = arith.constant 0 : index
    %c0_6 = arith.constant 0 : index
    %4 = vector.load %arg3[%c0_5, %c0_6] : memref<1x16xf32, #tpu.memory_space<vmem>>, vector<1x16xf32>
    %5 = vector.broadcast %4 : vector<1x16xf32> to vector<8x16xf32>
    %6 = arith.addf %2, %5 : vector<8x16xf32>
    %7 = vector.broadcast %3 : vector<8x1xf32> to vector<8x16xf32>
    %8 = arith.mulf %7, %6 : vector<8x16xf32>
    %c0_7 = arith.constant 0 : index
    %c0_8 = arith.constant 0 : index
    %9 = vector.load %arg5[%c0_7, %c0_8] : memref<8x16xf32, #tpu.memory_space<vmem>>, vector<8x16xf32>
    tpu.vector_store %arg5[%c0_7, %c0_8], %8 {strides = array<i32>} : memref<8x16xf32, #tpu.memory_space<vmem>>, vector<8x16xf32>,
    return
  }
  func.func @transform_0(%arg0: i32) -> (i32, i32) {
    %c0_i32 = arith.constant 0 : i32
    %c0_i32_0 = arith.constant 0 : i32
    return %arg0, %c0_i32 : i32, i32
  }
  func.func @transform_1(%arg0: i32) -> (i32, i32) {
    %c0_i32 = arith.constant 0 : i32
    %c0_i32_0 = arith.constant 0 : i32
    %c0_i32_1 = arith.constant 0 : i32
    return %c0_i32, %c0_i32_0 : i32, i32
  }
  func.func @transform_2(%arg0: i32) -> (i32, i32) {
    %c0_i32 = arith.constant 0 : i32
    %c0_i32_0 = arith.constant 0 : i32
    %c0_i32_1 = arith.constant 0 : i32
    return %c0_i32, %c0_i32_0 : i32, i32
  }
  func.func @transform_3(%arg0: i32) -> (i32, i32) {
    %c0_i32 = arith.constant 0 : i32
    %c0_i32_0 = arith.constant 0 : i32
    return %arg0, %c0_i32 : i32, i32
  }
  func.func @transform_4(%arg0: i32) -> (i32, i32) {
    %c0_i32 = arith.constant 0 : i32
    %c0_i32_0 = arith.constant 0 : i32
    return %arg0, %c0_i32 : i32, i32
  }
}

</mosaic_0001>

<llo_original>
// kernel: tpu_custom_call.1
$region0: #{tpu_custom_call.1}
  #allocation0 [shape = 'u32[]', space=smem, size = 0x4, offset = 0x4, fixed_abs, tag = 'smem constant byte address 0x4 - core index']
  #allocation1 [shape = 'u32[72,128]{1,0:T(1,128)}', space=vmem, size = 0x9000, scoped, tag = 'internal scratch']
  %s0 = inlined_call_operand.vmem [shape: f32[8,64], index: 0, kind: input, shape index: {}]
  %s1 = inlined_call_operand.vmem [shape: f32[64,16], index: 1, kind: input, shape index: {}]
  %s2 = inlined_call_operand.vmem [shape: f32[1,16], index: 2, kind: input, shape index: {}]
  %s3 = inlined_call_operand.vmem [shape: f32[8,1], index: 3, kind: input, shape index: {}]
  %s4 = inlined_call_operand.hbm [shape: f32[8,16], index: 4, kind: output, shape index: {}]
  %s5 = sld [smem:[#allocation0]]
  $region26: #{tpu_custom_call.1} parent=0
    _
  %s7 = ssub.s32 1, %s5
  %s8 = scalar_select 0, %s7, %s5
  $region1: #{tpu_custom_call.1} parent=0
    #allocation2 [shape = 'u8[4096]{0}', space=vmem, size = 0x1000, scoped, tag = 'output window, operand 0, single buffered']
    #allocation3 [shape = 's32[1]{0}', space=sflag, size = 0x4, scoped, tag = 'scoped memory for tpu_custom_call.1']
    %9 = vsyncpa [#allocation3], 0
    // Predicated region
    $region2: #{tpu_custom_call.1} parent=1 // pred_check
      _
    $region3: #{tpu_custom_call.1} parent=1 // pred_check_branch
      %11 = sbr.rel (0) target = $region5
    $region4: #{tpu_custom_call.1} parent=1 // pred_region
      _
    $region5: #{tpu_custom_call.1} parent=1 // pred_fallthru
      _
    // Predicated region
    $region6: #{tpu_custom_call.1} parent=1 // pred_check
      _
    $region7: #{tpu_custom_call.1} parent=1 // pred_check_branch
      %13 = sbr.rel (0) target = $region9
    $region8: #{tpu_custom_call.1} parent=1 // pred_region
      _
    $region9: #{tpu_custom_call.1} parent=1 // pred_fallthru
      _
    // Predicated region
    $region10: #{tpu_custom_call.1} parent=1 // pred_check
      _
    $region11: #{tpu_custom_call.1} parent=1 // pred_check_branch
      %15 = sbr.rel (0) target = $region13
    $region12: #{tpu_custom_call.1} parent=1 // pred_region
      _
    $region13: #{tpu_custom_call.1} parent=1 // pred_fallthru
      _
    // Predicated region
    $region14: #{tpu_custom_call.1} parent=1 // pred_check
      _
    $region15: #{tpu_custom_call.1} parent=1 // pred_check_branch
      %17 = sbr.rel (0) target = $region17
    $region16: #{tpu_custom_call.1} parent=1 // pred_region
      _
    $region17: #{tpu_custom_call.1} parent=1 // pred_fallthru
      _
    %v18 = vld [vmem:[%s0] sm:$0xff]
    %v19 = vld [vmem:[%s1] sm:$0xff]
    %v20 = vld [vmem:[%s1 + $0x8] sm:$0xff]
    %v21 = vld [vmem:[%s1 + $0x10] sm:$0xff]
    %v22 = vld [vmem:[%s1 + $0x18] sm:$0xff]
    %v23 = vld [vmem:[%s1 + $0x20] sm:$0xff]
    %v24 = vld [vmem:[%s1 + $0x28] sm:$0xff]
    %v25 = vld [vmem:[%s1 + $0x30] sm:$0xff]
    %v26 = vld [vmem:[%s1 + $0x38] sm:$0xff]
    %v27 = vld [vmem:[%s3] sm:$0xff]
    %v28 = vld [vmem:[%s2] sm:$0x1]
    %v30 = vperm.slane %v28, 0
    %vm32 = vcmask 523264
    %v34 = vsel %vm32, %v18, 0
    %36 = vmatpush.msra.mxu0 0.0
    %37 = vmatpush.msra.mxu0 0.0
    %38 = vmatpush.msra.mxu0 0.0
    %39 = vmatpush.msra.mxu0 0.0
    %40 = vmatpush.msra.mxu0 0.0
    %41 = vmatpush.msra.mxu0 0.0
    %42 = vmatpush.msra.mxu0 0.0
    %43 = vmatpush.msra.mxu0 0.0
    %44 = vmatpush.msra.mxu0 %v26
    %45 = vmatpush.msra.mxu0 %v25
    %46 = vmatpush.msra.mxu0 %v24
    %47 = vmatpush.msra.mxu0 %v23
    %48 = vmatpush.msra.mxu0 %v22
    %49 = vmatpush.msra.mxu0 %v21
    %50 = vmatpush.msra.mxu0 %v20
    %51 = vmatpush.msra.mxu0 %v19
    %52 = vmatmul.f32.gmra.mxu0 %v34
    %v53 = vpop.f32.mrf.mxu0
    %v54 = vadd.f32 %v30, %v53
    %55 = vdwg.mxu0
    %57 = vset.pattern.permute.xlu0 0
    %58 = vperm.xlu0 %57, %v27
    %v59 = vpop.permute.xlu0 %58
    %v61 = vmul.f32 %v59, %v54
    %vm62 = vcmask 130048
    %63 = vst.msk [vmem:[#allocation2] sm:$0xff] %vm62, %v61
    // Predicated region
    $region18: #{tpu_custom_call.1} parent=1 // pred_check
      _
    $region19: #{tpu_custom_call.1} parent=1 // pred_check_branch
      %65 = sbr.rel (0) target = $region21
    $region20: #{tpu_custom_call.1} parent=1 // pred_region
      %67 = vsyncadd [#allocation3], 0
      %s69 = sshll.u32 [#allocation2], 4
      %s70 = int_to_ptr.vmem [resolvable:$true] %s69
      %s71 = sshll.u32 %s4, 4
      %s72 = int_to_ptr.hbm [resolvable:$true] %s71
      %74 = dma.vmem_to_hbm [thread:$0]  %s70, 128, %s72, [#allocation3]
    $region21: #{tpu_custom_call.1} parent=1 // pred_fallthru
      _
    // Predicated region
    $region22: #{tpu_custom_call.1} parent=1 // pred_check
      _
    $region23: #{tpu_custom_call.1} parent=1 // pred_check_branch
      %76 = sbr.rel (0) target = $region25
    $region24: #{tpu_custom_call.1} parent=1 // pred_region
      %78 = dma.done [#allocation3], 128
    $region25: #{tpu_custom_call.1} parent=1 // pred_fallthru
      _
    %79 = vsyncpa [#allocation3], 1

</llo_original>
